<compile_context>
chip_gen: v7x
topology: tpu7x:2x2x1
jax: 0.10.0
libtpu: 0.0.40
codegen_flags: <defaults>
</compile_context>

<pallas_src>
import jax
import jax.numpy as jnp
from jax.experimental import pallas as pl
from jax.experimental.pallas import tpu as pltpu


def generate_node_kernel(ne_ref, cc_ref, emb_ref, w_ref, b_ref, out_ref):
    # ne:  [B, H]           f32   (grid-constant, single-buffered)
    # cc:  [B, H]           f32   (grid-constant, single-buffered)
    # emb: [B, E]           f32   (grid-constant, single-buffered)
    # w:   [2, D, tile_n]   bf16  (0 -> [w_l | w_r], 1 -> [w_lg | w_rg])
    # b:   [2, 1, tile_n]   f32
    # out: [B, tile_n]      f32   = tanh(x @ w[0] + b[0]) * sigmoid(x @ w[1] + b[1])
    x = jnp.concatenate(
        [ne_ref[...], cc_ref[...], emb_ref[...]], axis=1
    ).astype(jnp.bfloat16)
    lin = jnp.dot(x, w_ref[0], preferred_element_type=jnp.float32) + b_ref[0]
    gate = jnp.dot(x, w_ref[1], preferred_element_type=jnp.float32) + b_ref[1]
    out_ref[...] = (jnp.tanh(lin) * jax.nn.sigmoid(gate)).astype(out_ref.dtype)


def _fused_weight_block_bytes(d, tile_n):
    # [2, D, tile_n] bf16, double-buffered by the pipeline.
    return 2 * (2 * d * tile_n * 2)


def _pick_tile_n(n, d):
    """Lane-aligned tile of the fused N axis.

    Prefers >= 2 grid steps (so ("parallel",) can shard across both v7x
    TensorCores) and keeps the double-buffered weight block under a VMEM
    budget; falls back to the full N for small (toy) problems."""
    budget = 20 * 1024 * 1024
    cands = [c for c in (512, 256, 128) if n % c == 0]
    for c in cands:                       # prefer >= 2 grid steps
        if n // c >= 2 and _fused_weight_block_bytes(d, c) <= budget:
            return c
    for c in cands:                       # otherwise the largest that fits
        if _fused_weight_block_bytes(d, c) <= budget:
            return c
    return cands[-1] if cands else n


def _vmem_limit_bytes(batch, d, h, e, tile_n):
    """Right-sized scoped-VMEM request (+50% slack), capped at 32 MiB so it
    stays well inside v7x's 64 MiB physical VMEM per TensorCore."""
    bpad = max(16, ((batch + 15) // 16) * 16)        # bf16 x packs 16 sublanes
    w_bytes = _fused_weight_block_bytes(d, tile_n)   # fused weights, 2 buffers
    b_bytes = 2 * (2 * 8 * tile_n * 4)               # fused bias, 2 buffers
    x_bytes = bpad * (2 * h + e + 3 * 128) * 4       # ne/cc/emb f32, 1 buffer each
    o_bytes = 2 * bpad * tile_n * 4                  # f32 output, 2 buffers
    total = int(1.5 * (w_bytes + b_bytes + x_bytes + o_bytes))
    return min(32 * 1024 * 1024, max(4 * 1024 * 1024, total))


@jax.jit
def generate_node_forward(node_embedding, node_label, current_context, params):
    """Pallas implementation of GenerateNode.forward (eval mode, no dropout).

    node_embedding:   [B, 1, H] float32
    node_label:       [B] int32 indices into the op embedding table
    current_context:  [B, 1, H] float32
    Returns (l_child [B, H], r_child [B, H], node_label_ [B, E]).
    """
    w_all = params["w_all"]          # [2, D, 2H] bf16
    b_all = params["b_all"]          # [2, 1, 2H] f32
    H = w_all.shape[2] // 2
    D = w_all.shape[1]
    N = 2 * H

    # Embedding lookup — its result is a required module output, so this gather
    # stays as one small XLA op and feeds the kernel directly (no concat / cast
    # / x round-trip in the wrapper).
    node_label_ = jnp.take(params["embeddings"], node_label, axis=0)   # [B, E]

    ne = node_embedding[:, 0, :]                                       # [B, H]
    cc = current_context[:, 0, :]                                      # [B, H]
    B = ne.shape[0]
    E = node_label_.shape[1]

    tile_n = _pick_tile_n(N, D)
    grid = (N // tile_n,)

    def const_spec(shape):
        # Grid-constant block: single buffer (no second copy wasting VMEM).
        return pl.BlockSpec(shape, lambda j: (0, 0),
                            pipeline_mode=pl.Buffered(1))

    out = pl.pallas_call(
        generate_node_kernel,
        out_shape=jax.ShapeDtypeStruct((B, N), jnp.float32),
        grid=grid,
        in_specs=[
            const_spec((B, H)),                                  # ne
            const_spec((B, H)),                                  # cc
            const_spec((B, E)),                                  # node_label_
            pl.BlockSpec((2, D, tile_n), lambda j: (0, 0, j)),   # fused weights
            pl.BlockSpec((2, 1, tile_n), lambda j: (0, 0, j)),   # fused biases
        ],
        out_specs=pl.BlockSpec((B, tile_n), lambda j: (0, j)),
        compiler_params=pltpu.CompilerParams(
            dimension_semantics=("parallel",),
            vmem_limit_bytes=_vmem_limit_bytes(B, D, H, E, tile_n),
        ),
    )(ne, cc, node_label_, w_all, b_all)

    l_child = out[:, :H]
    r_child = out[:, H:]
    return l_child, r_child, node_label_


def init_params(key, hidden_size, op_nums, embedding_size):
    """PyTorch-equivalent raw weights, pre-fused ONCE at init time."""
    D = hidden_size * 2 + embedding_size
    H = hidden_size
    ks = jax.random.split(key, 9)
    scale = 0.1

    # nn.Linear stores weight as [out, in]; we keep [in, out] directly.
    w_l = scale * jax.random.normal(ks[1], (D, H), jnp.float32)
    b_l = scale * jax.random.normal(ks[2], (H,), jnp.float32)
    w_r = scale * jax.random.normal(ks[3], (D, H), jnp.float32)
    b_r = scale * jax.random.normal(ks[4], (H,), jnp.float32)
    w_lg = scale * jax.random.normal(ks[5], (D, H), jnp.float32)
    b_lg = scale * jax.random.normal(ks[6], (H,), jnp.float32)
    w_rg = scale * jax.random.normal(ks[7], (D, H), jnp.float32)
    b_rg = scale * jax.random.normal(ks[8], (H,), jnp.float32)

    # Single fused slabs: axis 0 = {lin, gate}; columns = [l | r] / [lg | rg].
    w_all = jnp.stack(
        [jnp.concatenate([w_l, w_r], axis=1),
         jnp.concatenate([w_lg, w_rg], axis=1)], axis=0).astype(jnp.bfloat16)
    b_all = jnp.stack(
        [jnp.concatenate([b_l, b_r]),
         jnp.concatenate([b_lg, b_rg])], axis=0).reshape(2, 1, 2 * H)

    return {
        "embeddings": scale * jax.random.normal(
            ks[0], (op_nums, embedding_size), jnp.float32),
        "w_all": w_all,          # [2, D, 2H] bf16
        "b_all": b_all,          # [2, 1, 2H] f32
    }


def reference_forward(node_embedding, node_label, current_context, params):
    """Pure-JAX reference mirroring the kernel numerics (bf16 weights/x, f32
    accumulation + f32 activations) — eval mode, no dropout."""
    w_all = params["w_all"].astype(jnp.float32)
    b_all = params["b_all"]
    H = w_all.shape[2] // 2
    node_label_ = jnp.take(params["embeddings"], node_label, axis=0)
    ne = node_embedding[:, 0, :]
    cc = current_context[:, 0, :]
    x = jnp.concatenate([ne, cc, node_label_], axis=1)
    x = x.astype(jnp.bfloat16).astype(jnp.float32)
    lin = x @ w_all[0] + b_all[0]
    gate = x @ w_all[1] + b_all[1]
    out = jnp.tanh(lin) * jax.nn.sigmoid(gate)
    return out[:, :H], out[:, H:], node_label_


if __name__ == "__main__":
    hidden_size = 32
    embedding_size = 32
    op_nums = 8
    batch = 2

    key = jax.random.PRNGKey(0)
    k_param, k_ne, k_cc, k_lbl = jax.random.split(key, 4)

    params = init_params(k_param, hidden_size, op_nums, embedding_size)

    node_embedding = jax.random.normal(k_ne, (batch, 1, hidden_size), jnp.float32)
    current_context = jax.random.normal(k_cc, (batch, 1, hidden_size), jnp.float32)
    node_label = jax.random.randint(k_lbl, (batch,), 0, op_nums, dtype=jnp.int32)

    l_child, r_child, node_label_ = generate_node_forward(
        node_embedding, node_label, current_context, params)
    jax.block_until_ready((l_child, r_child, node_label_))

    # Sanity check against the pure-JAX reference (same bf16 weights / f32 acc).
    l_ref, r_ref, emb_ref = reference_forward(
        node_embedding, node_label, current_context, params)
    assert l_child.shape == (batch, hidden_size)
    assert r_child.shape == (batch, hidden_size)
    assert node_label_.shape == (batch, embedding_size)
    assert jnp.allclose(l_child, l_ref, atol=2e-3), float(jnp.max(jnp.abs(l_child - l_ref)))
    assert jnp.allclose(r_child, r_ref, atol=2e-3), float(jnp.max(jnp.abs(r_child - r_ref)))
    assert jnp.allclose(node_label_, emb_ref, atol=1e-6)

    print("KERNEL_OK")
</pallas_src>

<mosaic_0001>
module attributes {stable_mosaic.version = 11 : i64} {
  func.func @generate_node_kernel(%arg0: i32, %arg1: memref<2x32xf32, #tpu.memory_space<vmem>>, %arg2: memref<2x32xf32, #tpu.memory_space<vmem>>, %arg3: memref<2x32xf32, #tpu.memory_space<vmem>>, %arg4: memref<2x96x64xbf16, #tpu.memory_space<vmem>>, %arg5: memref<2x1x64xf32, #tpu.memory_space<vmem>>, %arg6: memref<2x64xf32, #tpu.memory_space<vmem>>) attributes {dimension_semantics = [#tpu.dimension_semantics<parallel>], iteration_bounds = array<i64: 1>, scalar_prefetch = 0 : i64, scratch_operands = 0 : i64, tpu.core_type = #tpu.core_type<tc>, window_params = [{pipeline_mode = #tpu.pipeline_mode<synchronous>, transform_indices = @transform_0, window_bounds = array<i64: 2, 32>}, {pipeline_mode = #tpu.pipeline_mode<synchronous>, transform_indices = @transform_1, window_bounds = array<i64: 2, 32>}, {pipeline_mode = #tpu.pipeline_mode<synchronous>, transform_indices = @transform_2, window_bounds = array<i64: 2, 32>}, {transform_indices = @transform_3, window_bounds = array<i64: 2, 96, 64>}, {transform_indices = @transform_4, window_bounds = array<i64: 2, 1, 64>}, {transform_indices = @transform_5, window_bounds = array<i64: 2, 64>}]} {
    %c0 = arith.constant 0 : index
    %c0_0 = arith.constant 0 : index
    %0 = vector.load %arg1[%c0, %c0_0] : memref<2x32xf32, #tpu.memory_space<vmem>>, vector<2x32xf32>
    %c0_1 = arith.constant 0 : index
    %c0_2 = arith.constant 0 : index
    %1 = vector.load %arg2[%c0_1, %c0_2] : memref<2x32xf32, #tpu.memory_space<vmem>>, vector<2x32xf32>
    %c0_3 = arith.constant 0 : index
    %c0_4 = arith.constant 0 : index
    %2 = vector.load %arg3[%c0_3, %c0_4] : memref<2x32xf32, #tpu.memory_space<vmem>>, vector<2x32xf32>
    %3 = tpu.concatenate %0, %1, %2 in 1 : vector<2x32xf32>, vector<2x32xf32>, vector<2x32xf32> -> vector<2x96xf32>
    %4 = arith.truncf %3 : vector<2x96xf32> to vector<2x96xbf16>
    %c0_5 = arith.constant 0 : index
    %c0_6 = arith.constant 0 : index
    %c0_7 = arith.constant 0 : index
    %5 = vector.load %arg4[%c0_5, %c0_6, %c0_7] : memref<2x96x64xbf16, #tpu.memory_space<vmem>>, vector<1x96x64xbf16>
    %6 = vector.shape_cast %5 : vector<1x96x64xbf16> to vector<96x64xbf16>
    %cst = arith.constant dense<0.000000e+00> : vector<2x64xf32>
    %7 = tpu.matmul %4, %6, %cst {dimension_numbers = #tpu.dot_dimension_numbers<[1], [0], [0], [1], [0, 0, 1, 1], [], []>} : vector<2x96xbf16>, vector<96x64xbf16>, vector<2x64xf32> -> vector<2x64xf32>
    %c0_8 = arith.constant 0 : index
    %c0_9 = arith.constant 0 : index
    %c0_10 = arith.constant 0 : index
    %8 = vector.load %arg5[%c0_8, %c0_9, %c0_10] : memref<2x1x64xf32, #tpu.memory_space<vmem>>, vector<1x1x64xf32>
    %9 = vector.shape_cast %8 : vector<1x1x64xf32> to vector<1x64xf32>
    %10 = vector.broadcast %9 : vector<1x64xf32> to vector<2x64xf32>
    %11 = arith.addf %7, %10 : vector<2x64xf32>
    %c1 = arith.constant 1 : index
    %c0_11 = arith.constant 0 : index
    %c0_12 = arith.constant 0 : index
    %12 = vector.load %arg4[%c1, %c0_11, %c0_12] : memref<2x96x64xbf16, #tpu.memory_space<vmem>>, vector<1x96x64xbf16>
    %13 = vector.shape_cast %12 : vector<1x96x64xbf16> to vector<96x64xbf16>
    %cst_13 = arith.constant dense<0.000000e+00> : vector<2x64xf32>
    %14 = tpu.matmul %4, %13, %cst_13 {dimension_numbers = #tpu.dot_dimension_numbers<[1], [0], [0], [1], [0, 0, 1, 1], [], []>} : vector<2x96xbf16>, vector<96x64xbf16>, vector<2x64xf32> -> vector<2x64xf32>
    %c1_14 = arith.constant 1 : index
    %c0_15 = arith.constant 0 : index
    %c0_16 = arith.constant 0 : index
    %15 = vector.load %arg5[%c1_14, %c0_15, %c0_16] : memref<2x1x64xf32, #tpu.memory_space<vmem>>, vector<1x1x64xf32>
    %16 = vector.shape_cast %15 : vector<1x1x64xf32> to vector<1x64xf32>
    %17 = vector.broadcast %16 : vector<1x64xf32> to vector<2x64xf32>
    %18 = arith.addf %14, %17 : vector<2x64xf32>
    %19 = math.tanh %11 : vector<2x64xf32>
    %20 = arith.negf %18 : vector<2x64xf32>
    %21 = math.exp %20 : vector<2x64xf32>
    %cst_17 = arith.constant 1.000000e+00 : f32
    %22 = vector.broadcast %cst_17 : f32 to vector<2x64xf32>
    %23 = arith.addf %22, %21 : vector<2x64xf32>
    %24 = arith.divf %22, %23 : vector<2x64xf32>
    %25 = arith.mulf %19, %24 : vector<2x64xf32>
    %c0_18 = arith.constant 0 : index
    %c0_19 = arith.constant 0 : index
    %26 = vector.load %arg6[%c0_18, %c0_19] : memref<2x64xf32, #tpu.memory_space<vmem>>, vector<2x64xf32>
    tpu.vector_store %arg6[%c0_18, %c0_19], %25 {strides = array<i32>} : memref<2x64xf32, #tpu.memory_space<vmem>>, vector<2x64xf32>,
    return
  }
  func.func @transform_0(%arg0: i32) -> (i32, i32) {
    %c0_i32 = arith.constant 0 : i32
    %c0_i32_0 = arith.constant 0 : i32
    %c0_i32_1 = arith.constant 0 : i32
    return %c0_i32, %c0_i32_0 : i32, i32
  }
  func.func @transform_1(%arg0: i32) -> (i32, i32) {
    %c0_i32 = arith.constant 0 : i32
    %c0_i32_0 = arith.constant 0 : i32
    %c0_i32_1 = arith.constant 0 : i32
    return %c0_i32, %c0_i32_0 : i32, i32
  }
  func.func @transform_2(%arg0: i32) -> (i32, i32) {
    %c0_i32 = arith.constant 0 : i32
    %c0_i32_0 = arith.constant 0 : i32
    %c0_i32_1 = arith.constant 0 : i32
    return %c0_i32, %c0_i32_0 : i32, i32
  }
  func.func @transform_3(%arg0: i32) -> (i32, i32, i32) {
    %c0_i32 = arith.constant 0 : i32
    %c0_i32_0 = arith.constant 0 : i32
    %c0_i32_1 = arith.constant 0 : i32
    return %c0_i32, %c0_i32_0, %arg0 : i32, i32, i32
  }
  func.func @transform_4(%arg0: i32) -> (i32, i32, i32) {
    %c0_i32 = arith.constant 0 : i32
    %c0_i32_0 = arith.constant 0 : i32
    %c0_i32_1 = arith.constant 0 : i32
    return %c0_i32, %c0_i32_0, %arg0 : i32, i32, i32
  }
  func.func @transform_5(%arg0: i32) -> (i32, i32) {
    %c0_i32 = arith.constant 0 : i32
    %c0_i32_0 = arith.constant 0 : i32
    return %c0_i32, %arg0 : i32, i32
  }
}

</mosaic_0001>

<llo_original>
// kernel: generate_node_forward.1
$region0: #{generate_node_forward.1}
  #allocation0 [shape = 'u32[]', space=smem, size = 0x4, offset = 0x4, fixed_abs, tag = 'smem constant byte address 0x4 - core index']
  #allocation1 [shape = 'u32[144,128]{1,0:T(1,128)}', space=vmem, size = 0x12000, scoped, tag = 'internal scratch']
  %s0 = inlined_call_operand.vmem [shape: f32[2,32], index: 0, kind: input, shape index: {}]
  %s1 = inlined_call_operand.vmem [shape: f32[2,32], index: 1, kind: input, shape index: {}]
  %s2 = inlined_call_operand.vmem [shape: f32[2,32], index: 2, kind: input, shape index: {}]
  %s3 = inlined_call_operand.vmem [shape: bf16[2,96,64], index: 3, kind: input, shape index: {}]
  %s4 = inlined_call_operand.vmem [shape: f32[2,1,64], index: 4, kind: input, shape index: {}]
  %s5 = inlined_call_operand.vmem [shape: f32[2,64], index: 5, kind: output, shape index: {}]
  %s6 = sld [smem:[#allocation0]]
  $region30: #{generate_node_forward.1} parent=0
    _
  %s8 = ssub.s32 1, %s6
  %s9 = scalar_select 0, %s8, %s6
  // Predicated region
  $region2: #{generate_node_forward.1} parent=0 // pred_check
    _
  $region3: #{generate_node_forward.1} parent=0 // pred_check_branch
    %11 = sbr.rel (0) target = $region5
  $region4: #{generate_node_forward.1} parent=0 // pred_region
    _
  $region5: #{generate_node_forward.1} parent=0 // pred_fallthru
    _
  // Predicated region
  $region6: #{generate_node_forward.1} parent=0 // pred_check
    _
  $region7: #{generate_node_forward.1} parent=0 // pred_check_branch
    %13 = sbr.rel (0) target = $region9
  $region8: #{generate_node_forward.1} parent=0 // pred_region
    _
  $region9: #{generate_node_forward.1} parent=0 // pred_fallthru
    _
  // Predicated region
  $region10: #{generate_node_forward.1} parent=0 // pred_check
    _
  $region11: #{generate_node_forward.1} parent=0 // pred_check_branch
    %15 = sbr.rel (0) target = $region13
  $region12: #{generate_node_forward.1} parent=0 // pred_region
    _
  $region13: #{generate_node_forward.1} parent=0 // pred_fallthru
    _
  // Predicated region
  $region14: #{generate_node_forward.1} parent=0 // pred_check
    _
  $region15: #{generate_node_forward.1} parent=0 // pred_check_branch
    %17 = sbr.rel (0) target = $region17
  $region16: #{generate_node_forward.1} parent=0 // pred_region
    _
  $region17: #{generate_node_forward.1} parent=0 // pred_fallthru
    _
  // Predicated region
  $region18: #{generate_node_forward.1} parent=0 // pred_check
    _
  $region19: #{generate_node_forward.1} parent=0 // pred_check_branch
    %19 = sbr.rel (0) target = $region21
  $region20: #{generate_node_forward.1} parent=0 // pred_region
    _
  $region21: #{generate_node_forward.1} parent=0 // pred_fallthru
    _
  %v21 = vld [vmem:[%s0] sm:$0x3]
  %v22 = vld [vmem:[%s1] sm:$0x3]
  %v23 = vld [vmem:[%s2] sm:$0x3]
  %25 = vrot.lane.b32.xlu0 %v22, 32
  %v26 = vpop.permute.xlu0 %25
  %29 = vrot.lane.b32.xlu0 %v23, 64
  %v30 = vpop.permute.xlu0 %29
  %vm32 = vcmask 261120
  %v33 = vsel %vm32, %v21, %v26
  %vm34 = vcmask 523264
  %v35 = vsel %vm34, %v33, %v30
  %v36 = vpack.c.bf16 %v35, %v35
  %v37 = vld [vmem:[%s3] sm:$0xf]
  %v38 = vld [vmem:[%s3 + $0x4] sm:$0xf]
  %v39 = vld [vmem:[%s3 + $0x8] sm:$0xf]
  %v40 = vld [vmem:[%s3 + $0xc] sm:$0xf]
  %v41 = vld [vmem:[%s3 + $0x10] sm:$0xf]
  %v42 = vld [vmem:[%s3 + $0x14] sm:$0xf]
  %v43 = vld [vmem:[%s3 + $0x18] sm:$0xf]
  %v44 = vld [vmem:[%s3 + $0x1c] sm:$0xf]
  %v45 = vld [vmem:[%s3 + $0x20] sm:$0xf]
  %v46 = vld [vmem:[%s3 + $0x24] sm:$0xf]
  %v47 = vld [vmem:[%s3 + $0x28] sm:$0xf]
  %v48 = vld [vmem:[%s3 + $0x2c] sm:$0xf]
  %v49 = vld [vmem:[%s4] sm:$0x1]
  %v51 = vlaneseq
  %v52 = vshrl.u32 %v51, 7
  %v53 = vsub.s32 0, %v52
  %v54 = vrot.slane %v49, %v53
  %v68 = vunpack.c.l.b16 %v37
  %v69 = vunpack.c.l.b16 %v38
  %v70 = vunpack.c.l.b16 %v39
  %v71 = vunpack.c.l.b16 %v40
  %v72 = vunpack.c.l.b16 %v41
  %v73 = vunpack.c.l.b16 %v42
  %v74 = vunpack.c.l.b16 %v43
  %v75 = vunpack.c.l.b16 %v44
  %v76 = vunpack.c.l.b16 %v45
  %v77 = vunpack.c.l.b16 %v46
  %v78 = vunpack.c.l.b16 %v47
  %v79 = vunpack.c.l.b16 %v48
  %v80 = vpack.c.b16 %v69, %v68
  %v81 = vpack.c.b16 %v71, %v70
  %v82 = vpack.c.b16 %v73, %v72
  %v83 = vpack.c.b16 %v75, %v74
  %v84 = vpack.c.b16 %v77, %v76
  %v85 = vpack.c.b16 %v79, %v78
  %vm92 = vcmask 785408
  %v94 = vsel %vm92, %v36, 0
  %96 = vmatprep.subr.bf16.mxu0 0
  %97 = vmatpush1.bf16.msra.mxu0 %v80
  %98 = vmatprep.subr.bf16.mxu0 0
  %99 = vmatpush1.bf16.msra.mxu0 %v81
  %100 = vmatprep.subr.bf16.mxu0 0
  %101 = vmatpush1.bf16.msra.mxu0 %v82
  %102 = vmatprep.subr.bf16.mxu0 0
  %103 = vmatpush1.bf16.msra.mxu0 %v83
  %104 = vmatprep.subr.bf16.mxu0 0
  %105 = vmatpush1.bf16.msra.mxu0 %v84
  %106 = vmatprep.subr.bf16.mxu0 0
  %107 = vmatpush1.bf16.msra.mxu0 %v85
  %108 = vmatprep.subr.bf16.mxu0 0
  %109 = vmatpush1.bf16.msra.mxu0 0
  %110 = vmatprep.subr.bf16.mxu0 0
  %111 = vmatpush1.bf16.msra.mxu0 0
  %112 = vmatprep.subr.bf16.mxu0 0
  %113 = vmatpush1.bf16.msra.mxu0 0
  %114 = vmatprep.subr.bf16.mxu0 0
  %115 = vmatpush1.bf16.msra.mxu0 0
  %116 = vmatprep.subr.bf16.mxu0 0
  %117 = vmatpush1.bf16.msra.mxu0 0
  %118 = vmatprep.subr.bf16.mxu0 0
  %119 = vmatpush1.bf16.msra.mxu0 0
  %120 = vmatprep.subr.bf16.mxu0 0
  %121 = vmatpush1.bf16.msra.mxu0 0
  %122 = vmatprep.subr.bf16.mxu0 0
  %123 = vmatpush1.bf16.msra.mxu0 0
  %124 = vmatprep.subr.bf16.mxu0 0
  %125 = vmatpush1.bf16.msra.mxu0 0
  %126 = vmatprep.subr.bf16.mxu0 0
  %127 = vmatpush1.bf16.msra.mxu0 0
  %128 = vmatprep.mubr.bf16.mxu0 0
  %129 = vmatmul.mubr.bf16.gmra.mrb[0].mxu0 %v94
  %v130 = vpop.f32.mrb[0].mxu0
  %v131 = vadd.f32 %v54, %v130
  %v132 = vpop.f32.mrb[0].mxu0
  %v133 = vpop.f32.mrb[0].mxu0
  %v134 = vpop.f32.mrb[0].mxu0
  %135 = vdwg.mxu0
  %s136 = scalar_lea.vmem %s3, 48
  %v137 = vld [vmem:[%s136] sm:$0xf]
  %v138 = vld [vmem:[%s136 + $0x4] sm:$0xf]
  %v139 = vld [vmem:[%s136 + $0x8] sm:$0xf]
  %v140 = vld [vmem:[%s136 + $0xc] sm:$0xf]
  %v141 = vld [vmem:[%s136 + $0x10] sm:$0xf]
  %v142 = vld [vmem:[%s136 + $0x14] sm:$0xf]
  %v143 = vld [vmem:[%s136 + $0x18] sm:$0xf]
  %v144 = vld [vmem:[%s136 + $0x1c] sm:$0xf]
  %v145 = vld [vmem:[%s136 + $0x20] sm:$0xf]
  %v146 = vld [vmem:[%s136 + $0x24] sm:$0xf]
  %v147 = vld [vmem:[%s136 + $0x28] sm:$0xf]
  %v148 = vld [vmem:[%s136 + $0x2c] sm:$0xf]
  %s149 = scalar_lea.vmem %s4, 1
  %v150 = vld [vmem:[%s149] sm:$0x1]
  %v152 = vlaneseq
  %v153 = vshrl.u32 %v152, 7
  %v154 = vsub.s32 0, %v153
  %v155 = vrot.slane %v150, %v154
  %v169 = vunpack.c.l.b16 %v137
  %v170 = vunpack.c.l.b16 %v138
  %v171 = vunpack.c.l.b16 %v139
  %v172 = vunpack.c.l.b16 %v140
  %v173 = vunpack.c.l.b16 %v141
  %v174 = vunpack.c.l.b16 %v142
  %v175 = vunpack.c.l.b16 %v143
  %v176 = vunpack.c.l.b16 %v144
  %v177 = vunpack.c.l.b16 %v145
  %v178 = vunpack.c.l.b16 %v146
  %v179 = vunpack.c.l.b16 %v147
  %v180 = vunpack.c.l.b16 %v148
  %v181 = vpack.c.b16 %v170, %v169
  %v182 = vpack.c.b16 %v172, %v171
  %v183 = vpack.c.b16 %v174, %v173
  %v184 = vpack.c.b16 %v176, %v175
  %v185 = vpack.c.b16 %v178, %v177
  %v186 = vpack.c.b16 %v180, %v179
  %193 = vmatprep.subr.bf16.mxu0 0
  %194 = vmatpush1.bf16.msra.mxu0 %v181
  %195 = vmatprep.subr.bf16.mxu0 0
  %196 = vmatpush1.bf16.msra.mxu0 %v182
  %197 = vmatprep.subr.bf16.mxu0 0
  %198 = vmatpush1.bf16.msra.mxu0 %v183
  %199 = vmatprep.subr.bf16.mxu0 0
  %200 = vmatpush1.bf16.msra.mxu0 %v184
  %201 = vmatprep.subr.bf16.mxu0 0
  %202 = vmatpush1.bf16.msra.mxu0 %v185
  %203 = vmatprep.subr.bf16.mxu0 0
  %204 = vmatpush1.bf16.msra.mxu0 %v186
  %205 = vmatprep.subr.bf16.mxu0 0
  %206 = vmatpush1.bf16.msra.mxu0 0
  %207 = vmatprep.subr.bf16.mxu0 0
  %208 = vmatpush1.bf16.msra.mxu0 0
  %209 = vmatprep.subr.bf16.mxu0 0
  %210 = vmatpush1.bf16.msra.mxu0 0
  %211 = vmatprep.subr.bf16.mxu0 0
  %212 = vmatpush1.bf16.msra.mxu0 0
  %213 = vmatprep.subr.bf16.mxu0 0
  %214 = vmatpush1.bf16.msra.mxu0 0
  %215 = vmatprep.subr.bf16.mxu0 0
  %216 = vmatpush1.bf16.msra.mxu0 0
  %217 = vmatprep.subr.bf16.mxu0 0
  %218 = vmatpush1.bf16.msra.mxu0 0
  %219 = vmatprep.subr.bf16.mxu0 0
  %220 = vmatpush1.bf16.msra.mxu0 0
  %221 = vmatprep.subr.bf16.mxu0 0
  %222 = vmatpush1.bf16.msra.mxu0 0
  %223 = vmatprep.subr.bf16.mxu0 0
  %224 = vmatpush1.bf16.msra.mxu0 0
  %225 = vmatprep.mubr.bf16.mxu0 0
  %226 = vmatmul.mubr.bf16.gmra.mrb[0].mxu0 %v94
  %v227 = vpop.f32.mrb[0].mxu0
  %v228 = vadd.f32 %v155, %v227
  %v229 = vpop.f32.mrb[0].mxu0
  %v230 = vpop.f32.mrb[0].mxu0
  %v231 = vpop.f32.mrb[0].mxu0
  %232 = vdwg.mxu0
  %v233 = vtanh.pop %v131
  %v234 = vxor.u32 %v228, 2147483648
  %v235 = vmul.f32 %v234, 1.442695
  %v236 = vpow.pop %v235
  %v237 = vadd.f32 %v236, 1.0
  %v238 = vrcp.pop %v237
  %v239 = vmul.f32 1.0, %v238
  %v240 = vmul.f32 %v233, %v239
  %vm241 = vcmask 517120
  %242 = vst.msk [vmem:[%s5] sm:$0x3] %vm241, %v240
  // Predicated region
  $region22: #{generate_node_forward.1} parent=0 // pred_check
    _
  $region23: #{generate_node_forward.1} parent=0 // pred_check_branch
    %244 = sbr.rel (0) target = $region25
  $region24: #{generate_node_forward.1} parent=0 // pred_region
    _
  $region25: #{generate_node_forward.1} parent=0 // pred_fallthru
    _
  // Predicated region
  $region26: #{generate_node_forward.1} parent=0 // pred_check
    _
  $region27: #{generate_node_forward.1} parent=0 // pred_check_branch
    %246 = sbr.rel (0) target = $region29
  $region28: #{generate_node_forward.1} parent=0 // pred_region
    _
  $region29: #{generate_node_forward.1} parent=0 // pred_fallthru
    _

</llo_original>
